<compile_context>
chip_gen: v5e
topology: v5e:2x2
jax: 0.10.0
libtpu: 0.0.40
codegen_flags: <defaults>
</compile_context>

<pallas_src>
import jax
import jax.numpy as jnp
from jax.experimental import pallas as pl
from jax.experimental.pallas import tpu as pltpu

_ROW_ALIGN = 8        # f32 sublane alignment for multi-tile row blocks
_SPLIT_MIN = 2048     # batches at least this big always get >= 2 tiles (v7x megacore)


def _cdiv(a, b):
    return -(-a // b)


def _round_up(a, m):
    return ((a + m - 1) // m) * m


def _mlp_kernel(x_ref, w1_ref, b1_ref, w2_ref, b2_ref, w3_ref, b3_ref,
                w4_ref, b4_ref, o_ref):
    # x streamed as f32 from HBM, cast to bf16 on the VPU (halves total
    # input-side traffic vs. a wrapper-side cast pass).
    x = x_ref[...].astype(jnp.bfloat16)
    # Layer 1: Linear + ReLU (Dropout == identity at inference).
    h = jnp.dot(x, w1_ref[...], preferred_element_type=jnp.float32) + b1_ref[...]
    h = jnp.maximum(h, 0.0)
    # Layer 2: Linear + ReLU.
    h = jnp.dot(h.astype(jnp.bfloat16), w2_ref[...],
                preferred_element_type=jnp.float32) + b2_ref[...]
    h = jnp.maximum(h, 0.0)
    # Layer 3: Linear + ReLU.
    h = jnp.dot(h.astype(jnp.bfloat16), w3_ref[...],
                preferred_element_type=jnp.float32) + b3_ref[...]
    h = jnp.maximum(h, 0.0)
    # Output layer: Linear(H -> 2), stored narrow (8 B/row HBM write).
    out = jnp.dot(h.astype(jnp.bfloat16), w4_ref[...],
                  preferred_element_type=jnp.float32) + b4_ref[...]
    o_ref[...] = out.astype(o_ref.dtype)


def prepare_params(params):
    """One-time prep: bf16 weights (MXU streams), f32 (1, n) biases."""
    def w(a):
        return jnp.asarray(a, jnp.bfloat16)

    def b(a):
        return jnp.asarray(a, jnp.float32).reshape(1, -1)

    return dict(w1=w(params["w1"]), b1=b(params["b1"]),
                w2=w(params["w2"]), b2=b(params["b2"]),
                w3=w(params["w3"]), b3=b(params["b3"]),
                w4=w(params["w4"]), b4=b(params["b4"]))


def _choose_tiles(n, block_m):
    """Pick (rows_per_tile, n_tiles). Large batches get >= 2 balanced tiles."""
    if n <= block_m and n < _SPLIT_MIN:
        return n, 1                       # single tile == full array dims (always legal)
    n_tiles = max(2, _cdiv(n, block_m))   # >= 2 tiles -> both v7x TensorCores busy
    bm = _round_up(_cdiv(n, n_tiles), _ROW_ALIGN)
    return bm, _cdiv(n, bm)


def propensity_net_forward(x, prepared, *, block_m=8192):
    """propensityNet eval-mode forward as a single fused Pallas kernel.

    x: [N, F] float32; prepared: output of prepare_params().
    Returns [N, 2] float32 raw logits.
    """
    N, F = x.shape
    H = prepared["w1"].shape[1]
    n_out = prepared["w4"].shape[1]       # == 2

    bm, n_tiles = _choose_tiles(N, int(block_m))
    n_rows = bm * n_tiles
    # Pad only if the grid does not exactly cover N (usually a no-op).
    x_in = x.astype(jnp.float32)
    if n_rows != N:
        x_in = jnp.pad(x_in, ((0, n_rows - N), (0, 0)))

    weight_bytes = sum(int(prepared[k].size) * prepared[k].dtype.itemsize
                       for k in prepared)
    cost = pl.CostEstimate(
        flops=2 * n_rows * (F * H + 2 * H * H + H * n_out),
        transcendentals=0,
        bytes_accessed=n_rows * F * 4 + n_rows * n_out * 4 + weight_bytes,
    )

    def resident(shape):
        # Constant index map -> Pallas keeps the (tiny) weights resident.
        return pl.BlockSpec(shape, lambda i: (0, 0))

    out = pl.pallas_call(
        _mlp_kernel,
        out_shape=jax.ShapeDtypeStruct((n_rows, n_out), jnp.float32),
        grid_spec=pltpu.PrefetchScalarGridSpec(
            num_scalar_prefetch=0,
            grid=(n_tiles,),
            in_specs=[
                pl.BlockSpec((bm, F), lambda i: (i, 0)),      # x: streamed rows (f32)
                resident((F, H)), resident((1, H)),           # layer 1
                resident((H, H)), resident((1, H)),           # layer 2
                resident((H, H)), resident((1, H)),           # layer 3
                resident((H, n_out)), resident((1, n_out)),   # output layer (H -> 2)
            ],
            out_specs=pl.BlockSpec((bm, n_out), lambda i: (i, 0)),
        ),
        compiler_params=pltpu.CompilerParams(
            dimension_semantics=("parallel",),
            vmem_limit_bytes=32 * 1024 * 1024,
        ),
        cost_estimate=cost,
    )(x_in, prepared["w1"], prepared["b1"], prepared["w2"], prepared["b2"],
      prepared["w3"], prepared["b3"], prepared["w4"], prepared["b4"])

    return out[:N]


def init_params(key, n_features, n_hidden=32):
    """Deterministic init mimicking torch.nn.Linear default (U[-1/sqrt(fan_in), +])."""
    keys = jax.random.split(key, 8)

    def linear(kw, kb, fan_in, fan_out):
        bound = 1.0 / jnp.sqrt(jnp.float32(fan_in))
        w = jax.random.uniform(kw, (fan_in, fan_out), jnp.float32, -bound, bound)
        b = jax.random.uniform(kb, (1, fan_out), jnp.float32, -bound, bound)
        return w, b

    w1, b1 = linear(keys[0], keys[1], n_features, n_hidden)
    w2, b2 = linear(keys[2], keys[3], n_hidden, n_hidden)
    w3, b3 = linear(keys[4], keys[5], n_hidden, n_hidden)
    w4, b4 = linear(keys[6], keys[7], n_hidden, 2)
    return dict(w1=w1, b1=b1, w2=w2, b2=b2, w3=w3, b3=b3, w4=w4, b4=b4)


def reference_forward(x, p):
    """Pure f32 reference (PyTorch eval-mode forward)."""
    h = jnp.maximum(x @ p["w1"] + p["b1"], 0.0)
    h = jnp.maximum(h @ p["w2"] + p["b2"], 0.0)
    h = jnp.maximum(h @ p["w3"] + p["b3"], 0.0)
    return h @ p["w4"] + p["b4"]


def reference_forward_bf16(x, p):
    """Mirrors the kernel numerics: bf16 operands, f32 accumulation."""
    def dot(a, w):
        return jnp.dot(a.astype(jnp.bfloat16), w.astype(jnp.bfloat16),
                       preferred_element_type=jnp.float32)
    h = jnp.maximum(dot(x, p["w1"]) + p["b1"], 0.0)
    h = jnp.maximum(dot(h, p["w2"]) + p["b2"], 0.0)
    h = jnp.maximum(dot(h, p["w3"]) + p["b3"], 0.0)
    return dot(h, p["w4"]) + p["b4"]


if __name__ == "__main__":
    key = jax.random.PRNGKey(0)
    k_x, k_x2, k_p = jax.random.split(key, 3)

    F, H = 16, 32
    params = init_params(k_p, n_features=F, n_hidden=H)
    prepared = prepare_params(params)

    # Small single-tile case (block == full array dims).
    N = 8
    x = jax.random.normal(k_x, (N, F), jnp.float32)
    out = jax.block_until_ready(propensity_net_forward(x, prepared))
    assert out.shape == (N, 2)
    assert jnp.allclose(out, reference_forward_bf16(x, params), atol=1e-3, rtol=1e-3), \
        "mismatch vs bf16-matched reference (single tile)"
    assert jnp.allclose(out, reference_forward(x, params), atol=1e-1, rtol=1e-1), \
        "mismatch vs f32 reference (single tile)"

    # Multi-tile + padded-tail case (exercises grid balancing & tail padding).
    N2 = 100
    x2 = jax.random.normal(k_x2, (N2, F), jnp.float32)
    out2 = jax.block_until_ready(propensity_net_forward(x2, prepared, block_m=32))
    assert out2.shape == (N2, 2)
    assert jnp.allclose(out2, reference_forward_bf16(x2, params), atol=1e-3, rtol=1e-3), \
        "mismatch vs bf16-matched reference (multi tile)"

    print("KERNEL_OK")
</pallas_src>

<mosaic_0001>
module attributes {stable_mosaic.version = 11 : i64} {
  func.func @_mlp_kernel(%arg0: i32, %arg1: memref<8x16xf32, #tpu.memory_space<vmem>>, %arg2: memref<16x32xbf16, #tpu.memory_space<vmem>>, %arg3: memref<1x32xf32, #tpu.memory_space<vmem>>, %arg4: memref<32x32xbf16, #tpu.memory_space<vmem>>, %arg5: memref<1x32xf32, #tpu.memory_space<vmem>>, %arg6: memref<32x32xbf16, #tpu.memory_space<vmem>>, %arg7: memref<1x32xf32, #tpu.memory_space<vmem>>, %arg8: memref<32x2xbf16, #tpu.memory_space<vmem>>, %arg9: memref<1x2xf32, #tpu.memory_space<vmem>>, %arg10: memref<8x2xf32, #tpu.memory_space<vmem>>) attributes {dimension_semantics = [#tpu.dimension_semantics<parallel>], iteration_bounds = array<i64: 1>, scalar_prefetch = 0 : i64, scratch_operands = 0 : i64, tpu.core_type = #tpu.core_type<tc>, window_params = [{transform_indices = @transform_0, window_bounds = array<i64: 8, 16>}, {pipeline_mode = #tpu.pipeline_mode<synchronous>, transform_indices = @transform_1, window_bounds = array<i64: 16, 32>}, {pipeline_mode = #tpu.pipeline_mode<synchronous>, transform_indices = @transform_2, window_bounds = array<i64: 1, 32>}, {pipeline_mode = #tpu.pipeline_mode<synchronous>, transform_indices = @transform_3, window_bounds = array<i64: 32, 32>}, {pipeline_mode = #tpu.pipeline_mode<synchronous>, transform_indices = @transform_4, window_bounds = array<i64: 1, 32>}, {pipeline_mode = #tpu.pipeline_mode<synchronous>, transform_indices = @transform_5, window_bounds = array<i64: 32, 32>}, {pipeline_mode = #tpu.pipeline_mode<synchronous>, transform_indices = @transform_6, window_bounds = array<i64: 1, 32>}, {pipeline_mode = #tpu.pipeline_mode<synchronous>, transform_indices = @transform_7, window_bounds = array<i64: 32, 2>}, {pipeline_mode = #tpu.pipeline_mode<synchronous>, transform_indices = @transform_8, window_bounds = array<i64: 1, 2>}, {transform_indices = @transform_9, window_bounds = array<i64: 8, 2>}]} {
    %c0 = arith.constant 0 : index
    %c0_0 = arith.constant 0 : index
    %0 = vector.load %arg1[%c0, %c0_0] : memref<8x16xf32, #tpu.memory_space<vmem>>, vector<8x16xf32>
    %1 = arith.truncf %0 : vector<8x16xf32> to vector<8x16xbf16>
    %c0_1 = arith.constant 0 : index
    %c0_2 = arith.constant 0 : index
    %2 = vector.load %arg2[%c0_1, %c0_2] : memref<16x32xbf16, #tpu.memory_space<vmem>>, vector<16x32xbf16>
    %cst = arith.constant dense<0.000000e+00> : vector<8x32xf32>
    %3 = tpu.matmul %1, %2, %cst {dimension_numbers = #tpu.dot_dimension_numbers<[1], [0], [0], [1], [0, 0, 1, 1], [], []>} : vector<8x16xbf16>, vector<16x32xbf16>, vector<8x32xf32> -> vector<8x32xf32>
    %c0_3 = arith.constant 0 : index
    %c0_4 = arith.constant 0 : index
    %4 = vector.load %arg3[%c0_3, %c0_4] : memref<1x32xf32, #tpu.memory_space<vmem>>, vector<1x32xf32>
    %5 = vector.broadcast %4 : vector<1x32xf32> to vector<8x32xf32>
    %6 = arith.addf %3, %5 : vector<8x32xf32>
    %cst_5 = arith.constant 0.000000e+00 : f32
    %7 = vector.broadcast %cst_5 : f32 to vector<8x32xf32>
    %8 = arith.maximumf %6, %7 : vector<8x32xf32>
    %9 = arith.truncf %8 : vector<8x32xf32> to vector<8x32xbf16>
    %c0_6 = arith.constant 0 : index
    %c0_7 = arith.constant 0 : index
    %10 = vector.load %arg4[%c0_6, %c0_7] : memref<32x32xbf16, #tpu.memory_space<vmem>>, vector<32x32xbf16>
    %cst_8 = arith.constant dense<0.000000e+00> : vector<8x32xf32>
    %11 = tpu.matmul %9, %10, %cst_8 {dimension_numbers = #tpu.dot_dimension_numbers<[1], [0], [0], [1], [0, 0, 1, 1], [], []>} : vector<8x32xbf16>, vector<32x32xbf16>, vector<8x32xf32> -> vector<8x32xf32>
    %c0_9 = arith.constant 0 : index
    %c0_10 = arith.constant 0 : index
    %12 = vector.load %arg5[%c0_9, %c0_10] : memref<1x32xf32, #tpu.memory_space<vmem>>, vector<1x32xf32>
    %13 = vector.broadcast %12 : vector<1x32xf32> to vector<8x32xf32>
    %14 = arith.addf %11, %13 : vector<8x32xf32>
    %cst_11 = arith.constant 0.000000e+00 : f32
    %15 = vector.broadcast %cst_11 : f32 to vector<8x32xf32>
    %16 = arith.maximumf %14, %15 : vector<8x32xf32>
    %17 = arith.truncf %16 : vector<8x32xf32> to vector<8x32xbf16>
    %c0_12 = arith.constant 0 : index
    %c0_13 = arith.constant 0 : index
    %18 = vector.load %arg6[%c0_12, %c0_13] : memref<32x32xbf16, #tpu.memory_space<vmem>>, vector<32x32xbf16>
    %cst_14 = arith.constant dense<0.000000e+00> : vector<8x32xf32>
    %19 = tpu.matmul %17, %18, %cst_14 {dimension_numbers = #tpu.dot_dimension_numbers<[1], [0], [0], [1], [0, 0, 1, 1], [], []>} : vector<8x32xbf16>, vector<32x32xbf16>, vector<8x32xf32> -> vector<8x32xf32>
    %c0_15 = arith.constant 0 : index
    %c0_16 = arith.constant 0 : index
    %20 = vector.load %arg7[%c0_15, %c0_16] : memref<1x32xf32, #tpu.memory_space<vmem>>, vector<1x32xf32>
    %21 = vector.broadcast %20 : vector<1x32xf32> to vector<8x32xf32>
    %22 = arith.addf %19, %21 : vector<8x32xf32>
    %cst_17 = arith.constant 0.000000e+00 : f32
    %23 = vector.broadcast %cst_17 : f32 to vector<8x32xf32>
    %24 = arith.maximumf %22, %23 : vector<8x32xf32>
    %25 = arith.truncf %24 : vector<8x32xf32> to vector<8x32xbf16>
    %c0_18 = arith.constant 0 : index
    %c0_19 = arith.constant 0 : index
    %26 = vector.load %arg8[%c0_18, %c0_19] : memref<32x2xbf16, #tpu.memory_space<vmem>>, vector<32x2xbf16>
    %cst_20 = arith.constant dense<0.000000e+00> : vector<8x2xf32>
    %27 = tpu.matmul %25, %26, %cst_20 {dimension_numbers = #tpu.dot_dimension_numbers<[1], [0], [0], [1], [0, 0, 1, 1], [], []>} : vector<8x32xbf16>, vector<32x2xbf16>, vector<8x2xf32> -> vector<8x2xf32>
    %c0_21 = arith.constant 0 : index
    %c0_22 = arith.constant 0 : index
    %28 = vector.load %arg9[%c0_21, %c0_22] : memref<1x2xf32, #tpu.memory_space<vmem>>, vector<1x2xf32>
    %29 = vector.broadcast %28 : vector<1x2xf32> to vector<8x2xf32>
    %30 = arith.addf %27, %29 : vector<8x2xf32>
    %c0_23 = arith.constant 0 : index
    %c0_24 = arith.constant 0 : index
    %31 = vector.load %arg10[%c0_23, %c0_24] : memref<8x2xf32, #tpu.memory_space<vmem>>, vector<8x2xf32>
    tpu.vector_store %arg10[%c0_23, %c0_24], %30 {strides = array<i32>} : memref<8x2xf32, #tpu.memory_space<vmem>>, vector<8x2xf32>,
    return
  }
  func.func @transform_0(%arg0: i32) -> (i32, i32) {
    %c0_i32 = arith.constant 0 : i32
    %c0_i32_0 = arith.constant 0 : i32
    return %arg0, %c0_i32 : i32, i32
  }
  func.func @transform_1(%arg0: i32) -> (i32, i32) {
    %c0_i32 = arith.constant 0 : i32
    %c0_i32_0 = arith.constant 0 : i32
    %c0_i32_1 = arith.constant 0 : i32
    return %c0_i32, %c0_i32_0 : i32, i32
  }
  func.func @transform_2(%arg0: i32) -> (i32, i32) {
    %c0_i32 = arith.constant 0 : i32
    %c0_i32_0 = arith.constant 0 : i32
    %c0_i32_1 = arith.constant 0 : i32
    return %c0_i32, %c0_i32_0 : i32, i32
  }
  func.func @transform_3(%arg0: i32) -> (i32, i32) {
    %c0_i32 = arith.constant 0 : i32
    %c0_i32_0 = arith.constant 0 : i32
    %c0_i32_1 = arith.constant 0 : i32
    return %c0_i32, %c0_i32_0 : i32, i32
  }
  func.func @transform_4(%arg0: i32) -> (i32, i32) {
    %c0_i32 = arith.constant 0 : i32
    %c0_i32_0 = arith.constant 0 : i32
    %c0_i32_1 = arith.constant 0 : i32
    return %c0_i32, %c0_i32_0 : i32, i32
  }
  func.func @transform_5(%arg0: i32) -> (i32, i32) {
    %c0_i32 = arith.constant 0 : i32
    %c0_i32_0 = arith.constant 0 : i32
    %c0_i32_1 = arith.constant 0 : i32
    return %c0_i32, %c0_i32_0 : i32, i32
  }
  func.func @transform_6(%arg0: i32) -> (i32, i32) {
    %c0_i32 = arith.constant 0 : i32
    %c0_i32_0 = arith.constant 0 : i32
    %c0_i32_1 = arith.constant 0 : i32
    return %c0_i32, %c0_i32_0 : i32, i32
  }
  func.func @transform_7(%arg0: i32) -> (i32, i32) {
    %c0_i32 = arith.constant 0 : i32
    %c0_i32_0 = arith.constant 0 : i32
    %c0_i32_1 = arith.constant 0 : i32
    return %c0_i32, %c0_i32_0 : i32, i32
  }
  func.func @transform_8(%arg0: i32) -> (i32, i32) {
    %c0_i32 = arith.constant 0 : i32
    %c0_i32_0 = arith.constant 0 : i32
    %c0_i32_1 = arith.constant 0 : i32
    return %c0_i32, %c0_i32_0 : i32, i32
  }
  func.func @transform_9(%arg0: i32) -> (i32, i32) {
    %c0_i32 = arith.constant 0 : i32
    %c0_i32_0 = arith.constant 0 : i32
    return %arg0, %c0_i32 : i32, i32
  }
}

</mosaic_0001>

<llo_original>
// kernel: tpu_custom_call.1
$region0: #{tpu_custom_call.1}
  #allocation0 [shape = 'u32[]', space=smem, size = 0x4, offset = 0x4, fixed_abs, tag = 'smem constant byte address 0x4 - core index']
  #allocation1 [shape = 'u32[72,128]{1,0:T(1,128)}', space=vmem, size = 0x9000, scoped, tag = 'internal scratch']
  %s0 = inlined_call_operand.hbm [shape: f32[8,16], index: 0, kind: input, shape index: {}]
  %s1 = inlined_call_operand.hbm [shape: bf16[16,32], index: 1, kind: input, shape index: {}]
  %s2 = inlined_call_operand.vmem [shape: f32[1,32], index: 2, kind: input, shape index: {}]
  %s3 = inlined_call_operand.vmem [shape: bf16[32,32], index: 3, kind: input, shape index: {}]
  %s4 = inlined_call_operand.vmem [shape: f32[1,32], index: 4, kind: input, shape index: {}]
  %s5 = inlined_call_operand.hbm [shape: bf16[32,32], index: 5, kind: input, shape index: {}]
  %s6 = inlined_call_operand.vmem [shape: f32[1,32], index: 6, kind: input, shape index: {}]
  %s7 = inlined_call_operand.vmem [shape: bf16[32,2], index: 7, kind: input, shape index: {}]
  %s8 = inlined_call_operand.vmem [shape: f32[1,2], index: 8, kind: input, shape index: {}]
  %s9 = inlined_call_operand.vmem [shape: f32[8,2], index: 9, kind: output, shape index: {}]
  %s10 = sld [smem:[#allocation0]]
  $region58: #{tpu_custom_call.1} parent=0
    _
  %s12 = ssub.s32 1, %s10
  %s13 = scalar_select 0, %s12, %s10
  $region1: #{tpu_custom_call.1} parent=0
    #allocation2 [shape = 'u8[4096]{0}', space=vmem, size = 0x1000, scoped, tag = 'input window, operand 0, single buffered']
    #allocation3 [shape = 's32[1]{0}', space=sflag, size = 0x4, scoped, tag = 'scoped memory for tpu_custom_call.1']
    #allocation4 [shape = 'u8[4096]{0}', space=vmem, size = 0x1000, scoped, tag = 'input window, operand 1, single buffered']
    #allocation5 [shape = 's32[1]{0}', space=sflag, size = 0x4, scoped, tag = 'scoped memory for tpu_custom_call.1']
    #allocation6 [shape = 'u8[8192]{0}', space=vmem, size = 0x2000, scoped, tag = 'input window, operand 5, single buffered']
    %14 = vsyncpa [#allocation3], 0
    %15 = vsyncpa [#allocation5], 0
    // Predicated region
    $region2: #{tpu_custom_call.1} parent=1 // pred_check
      _
    $region3: #{tpu_custom_call.1} parent=1 // pred_check_branch
      %17 = sbr.rel (0) target = $region5
    $region4: #{tpu_custom_call.1} parent=1 // pred_region
      %19 = vsyncadd [#allocation3], 0
      %s21 = sshll.u32 %s0, 4
      %s22 = int_to_ptr.hbm [resolvable:$true] %s21
      %s23 = sshll.u32 [#allocation2], 4
      %s24 = int_to_ptr.vmem [resolvable:$true] %s23
      %26 = dma.hbm_to_vmem [thread:$0]  %s22, 128, %s24, [#allocation3]
    $region5: #{tpu_custom_call.1} parent=1 // pred_fallthru
      _
    // Predicated region
    $region6: #{tpu_custom_call.1} parent=1 // pred_check
      _
    $region7: #{tpu_custom_call.1} parent=1 // pred_check_branch
      %28 = sbr.rel (0) target = $region9
    $region8: #{tpu_custom_call.1} parent=1 // pred_region
      %30 = vsyncadd [#allocation5], 0
      %s31 = sshll.u32 %s1, 4
      %s32 = int_to_ptr.hbm [resolvable:$true] %s31
      %s33 = sshll.u32 [#allocation4], 4
      %s34 = int_to_ptr.vmem [resolvable:$true] %s33
      %39 = dma.hbm_to_vmem [thread:$0]  %s32, 128, %s34, [#allocation5], 64, 64, 4
    $region9: #{tpu_custom_call.1} parent=1 // pred_fallthru
      _
    // Predicated region
    $region10: #{tpu_custom_call.1} parent=1 // pred_check
      _
    $region11: #{tpu_custom_call.1} parent=1 // pred_check_branch
      %41 = sbr.rel (0) target = $region13
    $region12: #{tpu_custom_call.1} parent=1 // pred_region
      _
    $region13: #{tpu_custom_call.1} parent=1 // pred_fallthru
      _
    // Predicated region
    $region14: #{tpu_custom_call.1} parent=1 // pred_check
      _
    $region15: #{tpu_custom_call.1} parent=1 // pred_check_branch
      %43 = sbr.rel (0) target = $region17
    $region16: #{tpu_custom_call.1} parent=1 // pred_region
      _
    $region17: #{tpu_custom_call.1} parent=1 // pred_fallthru
      _
    // Predicated region
    $region18: #{tpu_custom_call.1} parent=1 // pred_check
      _
    $region19: #{tpu_custom_call.1} parent=1 // pred_check_branch
      %45 = sbr.rel (0) target = $region21
    $region20: #{tpu_custom_call.1} parent=1 // pred_region
      _
    $region21: #{tpu_custom_call.1} parent=1 // pred_fallthru
      _
    // Predicated region
    $region22: #{tpu_custom_call.1} parent=1 // pred_check
      _
    $region23: #{tpu_custom_call.1} parent=1 // pred_check_branch
      %47 = sbr.rel (0) target = $region25
    $region24: #{tpu_custom_call.1} parent=1 // pred_region
      %49 = vsyncadd [#allocation5], 0
      %s50 = sshll.u32 %s5, 4
      %s51 = int_to_ptr.hbm [resolvable:$true] %s50
      %s52 = sshll.u32 [#allocation6], 4
      %s53 = int_to_ptr.vmem [resolvable:$true] %s52
      %58 = dma.hbm_to_vmem [thread:$0]  %s51, 256, %s53, [#allocation5], 64, 64, 4
    $region25: #{tpu_custom_call.1} parent=1 // pred_fallthru
      _
    // Predicated region
    $region26: #{tpu_custom_call.1} parent=1 // pred_check
      _
    $region27: #{tpu_custom_call.1} parent=1 // pred_check_branch
      %60 = sbr.rel (0) target = $region29
    $region28: #{tpu_custom_call.1} parent=1 // pred_region
      _
    $region29: #{tpu_custom_call.1} parent=1 // pred_fallthru
      _
    // Predicated region
    $region30: #{tpu_custom_call.1} parent=1 // pred_check
      _
    $region31: #{tpu_custom_call.1} parent=1 // pred_check_branch
      %62 = sbr.rel (0) target = $region33
    $region32: #{tpu_custom_call.1} parent=1 // pred_region
      _
    $region33: #{tpu_custom_call.1} parent=1 // pred_fallthru
      _
    // Predicated region
    $region34: #{tpu_custom_call.1} parent=1 // pred_check
      _
    $region35: #{tpu_custom_call.1} parent=1 // pred_check_branch
      %64 = sbr.rel (0) target = $region37
    $region36: #{tpu_custom_call.1} parent=1 // pred_region
      _
    $region37: #{tpu_custom_call.1} parent=1 // pred_fallthru
      _
    // Predicated region
    $region38: #{tpu_custom_call.1} parent=1 // pred_check
      _
    $region39: #{tpu_custom_call.1} parent=1 // pred_check_branch
      %66 = sbr.rel (0) target = $region41
    $region40: #{tpu_custom_call.1} parent=1 // pred_region
      %68 = dma.done [#allocation3], 128
    $region41: #{tpu_custom_call.1} parent=1 // pred_fallthru
      _
    // Predicated region
    $region42: #{tpu_custom_call.1} parent=1 // pred_check
      _
    $region43: #{tpu_custom_call.1} parent=1 // pred_check_branch
      %70 = sbr.rel (0) target = $region45
    $region44: #{tpu_custom_call.1} parent=1 // pred_region
      %72 = dma.done [#allocation5], 128
    $region45: #{tpu_custom_call.1} parent=1 // pred_fallthru
      _
    // Predicated region
    $region46: #{tpu_custom_call.1} parent=1 // pred_check
      _
    $region47: #{tpu_custom_call.1} parent=1 // pred_check_branch
      %74 = sbr.rel (0) target = $region49
    $region48: #{tpu_custom_call.1} parent=1 // pred_region
      %76 = dma.done [#allocation5], 256
    $region49: #{tpu_custom_call.1} parent=1 // pred_fallthru
      _
    %v78 = vld [vmem:[#allocation2] sm:$0xff]
    %v79 = vpack.c.bf16 %v78, %v78
    %v80 = vld [vmem:[#allocation4] sm:$0xf]
    %v81 = vld [vmem:[#allocation4 + $0x4] sm:$0xf]
    %v82 = vld [vmem:[%s2] sm:$0x1]
    %v84 = vperm.slane %v82, 0
    %v88 = vunpack.c.l.b16 %v80
    %v89 = vunpack.c.l.b16 %v81
    %v90 = vpack.c.b16 %v89, %v88
    %vm92 = vcmask 130048
    %v94 = vsel %vm92, %v79, 0
    %96 = vmatpush.bf16.msra.mxu0 0
    %97 = vmatpush.bf16.msra.mxu0 0
    %98 = vmatpush.bf16.msra.mxu0 0
    %99 = vmatpush.bf16.msra.mxu0 0
    %100 = vmatpush.bf16.msra.mxu0 0
    %101 = vmatpush.bf16.msra.mxu0 0
    %102 = vmatpush.bf16.msra.mxu0 0
    %103 = vmatpush.bf16.msra.mxu0 %v90
    %104 = vmatmul.bf16.gmra.mxu0 %v94
    %v105 = vpop.f32.mrf.mxu0
    %v106 = vadd.f32 %v84, %v105
    %v107 = vpop.f32.mrf.mxu0
    %108 = vdwg.mxu0
    %v109 = vmax.f32 %v106, 0.0
    %v110 = vpack.c.bf16 %v109, %v109
    %v111 = vld [vmem:[%s3] sm:$0xf]
    %v112 = vld [vmem:[%s3 + $0x4] sm:$0xf]
    %v113 = vld [vmem:[%s3 + $0x8] sm:$0xf]
    %v114 = vld [vmem:[%s3 + $0xc] sm:$0xf]
    %v115 = vld [vmem:[%s4] sm:$0x1]
    %v117 = vperm.slane %v115, 0
    %v123 = vunpack.c.l.b16 %v111
    %v124 = vunpack.c.l.b16 %v112
    %v125 = vunpack.c.l.b16 %v113
    %v126 = vunpack.c.l.b16 %v114
    %v127 = vpack.c.b16 %v124, %v123
    %v128 = vpack.c.b16 %v126, %v125
    %vm131 = vcmask 261120
    %v133 = vsel %vm131, %v110, 0
    %135 = vmatpush.bf16.msra.mxu0 0
    %136 = vmatpush.bf16.msra.mxu0 0
    %137 = vmatpush.bf16.msra.mxu0 0
    %138 = vmatpush.bf16.msra.mxu0 0
    %139 = vmatpush.bf16.msra.mxu0 0
    %140 = vmatpush.bf16.msra.mxu0 0
    %141 = vmatpush.bf16.msra.mxu0 %v128
    %142 = vmatpush.bf16.msra.mxu0 %v127
    %143 = vmatmul.bf16.gmra.mxu0 %v133
    %v144 = vpop.f32.mrf.mxu0
    %v145 = vadd.f32 %v117, %v144
    %v146 = vpop.f32.mrf.mxu0
    %147 = vdwg.mxu0
    %v148 = vmax.f32 %v145, 0.0
    %v149 = vpack.c.bf16 %v148, %v148
    %v150 = vld [vmem:[#allocation6] sm:$0xf]
    %v151 = vld [vmem:[#allocation6 + $0x4] sm:$0xf]
    %v152 = vld [vmem:[#allocation6 + $0x8] sm:$0xf]
    %v153 = vld [vmem:[#allocation6 + $0xc] sm:$0xf]
    %v154 = vld [vmem:[%s6] sm:$0x1]
    %v156 = vperm.slane %v154, 0
    %v162 = vunpack.c.l.b16 %v150
    %v163 = vunpack.c.l.b16 %v151
    %v164 = vunpack.c.l.b16 %v152
    %v165 = vunpack.c.l.b16 %v153
    %v166 = vpack.c.b16 %v163, %v162
    %v167 = vpack.c.b16 %v165, %v164
    %v171 = vsel %vm131, %v149, 0
    %173 = vmatpush.bf16.msra.mxu0 0
    %174 = vmatpush.bf16.msra.mxu0 0
    %175 = vmatpush.bf16.msra.mxu0 0
    %176 = vmatpush.bf16.msra.mxu0 0
    %177 = vmatpush.bf16.msra.mxu0 0
    %178 = vmatpush.bf16.msra.mxu0 0
    %179 = vmatpush.bf16.msra.mxu0 %v167
    %180 = vmatpush.bf16.msra.mxu0 %v166
    %181 = vmatmul.bf16.gmra.mxu0 %v171
    %v182 = vpop.f32.mrf.mxu0
    %v183 = vadd.f32 %v156, %v182
    %v184 = vpop.f32.mrf.mxu0
    %185 = vdwg.mxu0
    %v186 = vmax.f32 %v183, 0.0
    %v187 = vpack.c.bf16 %v186, %v186
    %v188 = vld [vmem:[%s7] sm:$0xf]
    %v189 = vld [vmem:[%s7 + $0x4] sm:$0xf]
    %v190 = vld [vmem:[%s7 + $0x8] sm:$0xf]
    %v191 = vld [vmem:[%s7 + $0xc] sm:$0xf]
    %v192 = vld [vmem:[%s8] sm:$0x1]
    %v194 = vperm.slane %v192, 0
    %v200 = vunpack.c.l.b16 %v188
    %v201 = vunpack.c.l.b16 %v189
    %v202 = vunpack.c.l.b16 %v190
    %v203 = vunpack.c.l.b16 %v191
    %v204 = vpack.c.b16 %v201, %v200
    %v205 = vpack.c.b16 %v203, %v202
    %v209 = vsel %vm131, %v187, 0
    %211 = vmatpush.bf16.msra.mxu0 0
    %212 = vmatpush.bf16.msra.mxu0 0
    %213 = vmatpush.bf16.msra.mxu0 0
    %214 = vmatpush.bf16.msra.mxu0 0
    %215 = vmatpush.bf16.msra.mxu0 0
    %216 = vmatpush.bf16.msra.mxu0 0
    %217 = vmatpush.bf16.msra.mxu0 %v205
    %218 = vmatpush.bf16.msra.mxu0 %v204
    %219 = vmatmul.bf16.gmra.mxu0 %v209
    %v220 = vpop.f32.mrf.mxu0
    %v221 = vadd.f32 %v194, %v220
    %v222 = vpop.f32.mrf.mxu0
    %223 = vdwg.mxu0
    %vm224 = vcmask 15360
    %225 = vst.msk [vmem:[%s9] sm:$0xff] %vm224, %v221
    // Predicated region
    $region50: #{tpu_custom_call.1} parent=1 // pred_check
      _
    $region51: #{tpu_custom_call.1} parent=1 // pred_check_branch
      %227 = sbr.rel (0) target = $region53
    $region52: #{tpu_custom_call.1} parent=1 // pred_region
      _
    $region53: #{tpu_custom_call.1} parent=1 // pred_fallthru
      _
    // Predicated region
    $region54: #{tpu_custom_call.1} parent=1 // pred_check
      _
    $region55: #{tpu_custom_call.1} parent=1 // pred_check_branch
      %229 = sbr.rel (0) target = $region57
    $region56: #{tpu_custom_call.1} parent=1 // pred_region
      _
    $region57: #{tpu_custom_call.1} parent=1 // pred_fallthru
      _
    %230 = vsyncpa [#allocation3], 1
    %231 = vsyncpa [#allocation5], 1

</llo_original>
